<compile_context>
chip_gen: v6e
topology: v6e:2x2x1
jax: 0.10.0
libtpu: 0.0.40
codegen_flags: <defaults>
</compile_context>

<pallas_src>
import functools

import jax
import jax.numpy as jnp
from jax.experimental import pallas as pl
from jax.experimental.pallas import tpu as pltpu


# --------------------------------- kernels ----------------------------------

def _fused_kernel(x_ref, w_ref, bg_ref, o_ref, *, compute_dtype):
    """Fused PermEqui2_max batch-block.

    x_ref:  (Bb, N, D_in)        input block
    w_ref:  (2*D_in, D_out_p)    concat([Wg^T, -Wl^T], 0) — resident, pre-cast
    bg_ref: (1, D_out_p)         Gamma bias (f32), resident
    o_ref:  (Bb, N, D_out_p)     output block (lane-dense D_out_p)
    """
    Bb, N, D_in = x_ref.shape
    D_out = o_ref.shape[-1]

    x = x_ref[...]
    xm = jnp.max(x, axis=1, keepdims=True)                 # (Bb, 1, D_in)
    xm = jnp.broadcast_to(xm, (Bb, N, D_in))
    xcat = jnp.concatenate([x, xm], axis=-1)               # (Bb, N, 2*D_in)
    if xcat.dtype != compute_dtype:
        xcat = xcat.astype(compute_dtype)

    # Single MXU contraction: Gamma(x) - Lambda(max x) in one pass (Wl negated
    # in the wrapper). Standard dnums (K on dim 0 of the pre-transposed weight).
    y = jnp.dot(xcat.reshape(Bb * N, 2 * D_in), w_ref[...],
                preferred_element_type=jnp.float32)         # (Bb*N, D_out_p) f32
    y = y + bg_ref[...]
    o_ref[...] = y.reshape(Bb, N, D_out).astype(o_ref.dtype)


def _two_matmul_kernel(x_ref, wg_ref, wl_ref, bg_ref, o_ref, *, compute_dtype):
    """Fallback when 2*D_in exceeds one MXU K pass: separate Gamma / Lambda."""
    Bb, N, D_in = x_ref.shape
    D_out = o_ref.shape[-1]

    x = x_ref[...]
    xm = jnp.max(x, axis=1)                                 # (Bb, D_in)
    if x.dtype != compute_dtype:
        x = x.astype(compute_dtype)
        xm = xm.astype(compute_dtype)

    g = jnp.dot(x.reshape(Bb * N, D_in), wg_ref[...],
                preferred_element_type=jnp.float32)          # (Bb*N, D_out_p)
    g = g + bg_ref[...]
    lm = jnp.dot(xm, wl_ref[...], preferred_element_type=jnp.float32)
    y = g.reshape(Bb, N, D_out) - lm[:, None, :]
    o_ref[...] = y.astype(o_ref.dtype)


# --------------------------------- wrapper ----------------------------------

def _tpu_kind():
    try:
        return jax.devices()[0].device_kind.lower()
    except Exception:
        return ""


def _pick_batch_block(B, N, D_in, D_out_p, x_itemsize, w_itemsize, *,
                      is_multicore, vmem_budget_bytes):
    """Largest divisor of B whose full VMEM footprint fits the budget.

    Footprint accounted per grid step:
      2x double-buffered x block + 2x double-buffered out block
      + 2x resident weight copies (default double-buffering) + bias
      + f32 intermediates (concat operand and matmul accumulator).
    On multi-TC chips (v7x) keep >=2 grid steps so the "parallel" batch axis
    can shard across TensorCores; on 1-TC v5e/v6e use the biggest block.
    """
    weight_bytes = 2 * (2 * D_in) * D_out_p * w_itemsize + 8 * D_out_p * 4

    def fits(bb):
        x_blk = 2 * bb * N * D_in * x_itemsize
        o_blk = 2 * bb * N * D_out_p * x_itemsize
        interm = bb * N * (2 * D_in + D_out_p) * 4
        return weight_bytes + x_blk + o_blk + interm <= vmem_budget_bytes

    cap = B
    if is_multicore and B >= 2:
        cap = max(1, B // 2)

    best = 1
    for d in range(1, B + 1):
        if B % d == 0 and d <= cap and fits(d):
            best = d
    return best


def perm_equi2_max(x, gamma_w, gamma_b, lambda_w, *, compute_dtype=jnp.bfloat16):
    """PermEqui2_max forward: Gamma(x) - Lambda(max over set axis).

    x:        (B, N, D_in)
    gamma_w:  (D_out, D_in)  nn.Linear weight (PyTorch layout)
    gamma_b:  (D_out,)       nn.Linear bias
    lambda_w: (D_out, D_in)  nn.Linear(bias=False) weight
    compute_dtype: MXU operand dtype (accumulation is always f32). Default bf16
      hits MXU peak on v6e/v7x; pass jnp.float32 (or None) for exact f32.
    returns:  (B, N, D_out), dtype of x
    """
    B, N, D_in = x.shape
    D_out = gamma_w.shape[0]
    if compute_dtype is None:
        compute_dtype = x.dtype
    compute_dtype = jnp.dtype(compute_dtype)

    # Lane-dense output: pad D_out up to a multiple of 128 (unmasked stores).
    D_out_p = ((D_out + 127) // 128) * 128

    # One-time wrapper-side weight prep: transpose to (D_in, D_out), negate
    # Lambda, pad, cast. Resident operands are never touched per grid step.
    wg_t = gamma_w.T
    wl_t = lambda_w.T
    bg = gamma_b.astype(jnp.float32)
    if D_out_p != D_out:
        wg_t = jnp.pad(wg_t, ((0, 0), (0, D_out_p - D_out)))
        wl_t = jnp.pad(wl_t, ((0, 0), (0, D_out_p - D_out)))
        bg = jnp.pad(bg, ((0, D_out_p - D_out),))
    bg2 = bg.reshape(1, D_out_p)

    # Fuse Lambda + subtract into the Gamma matmul while 2*D_in fits one MXU
    # K pass (256 on v6e/v7x); otherwise the two-matmul form does less K work.
    fused = (2 * D_in) <= 256

    kind = _tpu_kind()
    is_v7x = ("v7" in kind) or ("7x" in kind)
    vmem_budget = (24 << 20) if is_v7x else (48 << 20)   # block budget
    vmem_limit = (48 << 20) if is_v7x else (96 << 20)    # scoped limit request

    bb = _pick_batch_block(B, N, D_in, D_out_p, x.dtype.itemsize,
                           compute_dtype.itemsize,
                           is_multicore=is_v7x, vmem_budget_bytes=vmem_budget)
    grid = (B // bb,)

    k_eff = 2 * D_in if fused else D_in
    flops = 2 * B * N * k_eff * D_out_p + (0 if fused else 2 * B * D_in * D_out_p)
    bytes_accessed = (x.size * x.dtype.itemsize
                      + B * N * D_out_p * x.dtype.itemsize
                      + 2 * D_in * D_out_p * compute_dtype.itemsize
                      + D_out_p * 4)
    cost = pl.CostEstimate(flops=flops, transcendentals=0,
                           bytes_accessed=bytes_accessed)

    common = dict(
        out_shape=jax.ShapeDtypeStruct((B, N, D_out_p), x.dtype),
        compiler_params=pltpu.CompilerParams(
            dimension_semantics=("parallel",),
            vmem_limit_bytes=vmem_limit,
        ),
        cost_estimate=cost,
    )

    if fused:
        w_cat = jnp.concatenate([wg_t, -wl_t], axis=0).astype(compute_dtype)
        kernel = functools.partial(_fused_kernel, compute_dtype=compute_dtype)
        out = pl.pallas_call(
            kernel,
            grid_spec=pltpu.PrefetchScalarGridSpec(
                num_scalar_prefetch=0,
                grid=grid,
                in_specs=[
                    pl.BlockSpec((bb, N, D_in), lambda b: (b, 0, 0)),
                    pl.BlockSpec((2 * D_in, D_out_p), lambda b: (0, 0)),  # resident W'
                    pl.BlockSpec((1, D_out_p), lambda b: (0, 0)),         # resident bias
                ],
                out_specs=pl.BlockSpec((bb, N, D_out_p), lambda b: (b, 0, 0)),
            ),
            **common,
        )(x, w_cat, bg2)
    else:
        wg_c = wg_t.astype(compute_dtype)
        wl_c = wl_t.astype(compute_dtype)
        kernel = functools.partial(_two_matmul_kernel, compute_dtype=compute_dtype)
        out = pl.pallas_call(
            kernel,
            grid_spec=pltpu.PrefetchScalarGridSpec(
                num_scalar_prefetch=0,
                grid=grid,
                in_specs=[
                    pl.BlockSpec((bb, N, D_in), lambda b: (b, 0, 0)),
                    pl.BlockSpec((D_in, D_out_p), lambda b: (0, 0)),      # resident Wg^T
                    pl.BlockSpec((D_in, D_out_p), lambda b: (0, 0)),      # resident Wl^T
                    pl.BlockSpec((1, D_out_p), lambda b: (0, 0)),         # resident bias
                ],
                out_specs=pl.BlockSpec((bb, N, D_out_p), lambda b: (b, 0, 0)),
            ),
            **common,
        )(x, wg_c, wl_c, bg2)

    if D_out_p != D_out:
        out = out[..., :D_out]
    return out


def reference(x, gamma_w, gamma_b, lambda_w):
    xm = jnp.max(x, axis=1, keepdims=True)
    return x @ gamma_w.T + gamma_b - xm @ lambda_w.T


if __name__ == "__main__":
    key = jax.random.PRNGKey(0)
    kx, kgw, kgb, klw = jax.random.split(key, 4)

    # Small but lane-dense shapes: D_out = 128 keeps output stores unmasked,
    # N = 16 keeps the in-kernel reshape layout-preserving (N % 8 == 0).
    B, N, D_in, D_out = 8, 16, 32, 128

    x = jax.random.normal(kx, (B, N, D_in), dtype=jnp.float32)

    # nn.Linear default init: uniform(-1/sqrt(in_dim), 1/sqrt(in_dim))
    bound = 1.0 / jnp.sqrt(jnp.float32(D_in))
    gamma_w = jax.random.uniform(kgw, (D_out, D_in), jnp.float32, -bound, bound)
    gamma_b = jax.random.uniform(kgb, (D_out,), jnp.float32, -bound, bound)
    lambda_w = jax.random.uniform(klw, (D_out, D_in), jnp.float32, -bound, bound)

    ref = reference(x, gamma_w, gamma_b, lambda_w)

    # Exact f32 compute path.
    out_f32 = jax.block_until_ready(
        perm_equi2_max(x, gamma_w, gamma_b, lambda_w, compute_dtype=jnp.float32))
    assert out_f32.shape == (B, N, D_out)
    assert jnp.allclose(out_f32, ref, atol=1e-5, rtol=1e-5), "f32 mismatch vs reference"

    # Default bf16-operand / f32-accumulate MXU path (v6e/v7x peak).
    out_bf16 = jax.block_until_ready(perm_equi2_max(x, gamma_w, gamma_b, lambda_w))
    assert out_bf16.shape == (B, N, D_out)
    assert jnp.allclose(out_bf16, ref, atol=5e-2, rtol=5e-2), "bf16 mismatch vs reference"

    print("KERNEL_OK")
</pallas_src>

<mosaic_0001>
module attributes {stable_mosaic.version = 11 : i64} {
  func.func @_fused_kernel(%arg0: i32, %arg1: memref<8x16x32xf32, #tpu.memory_space<vmem>>, %arg2: memref<64x128xf32, #tpu.memory_space<vmem>>, %arg3: memref<1x128xf32, #tpu.memory_space<vmem>>, %arg4: memref<8x16x128xf32, #tpu.memory_space<vmem>>) attributes {dimension_semantics = [#tpu.dimension_semantics<parallel>], iteration_bounds = array<i64: 1>, scalar_prefetch = 0 : i64, scratch_operands = 0 : i64, tpu.core_type = #tpu.core_type<tc>, window_params = [{transform_indices = @transform_0, window_bounds = array<i64: 8, 16, 32>}, {pipeline_mode = #tpu.pipeline_mode<synchronous>, transform_indices = @transform_1, window_bounds = array<i64: 64, 128>}, {pipeline_mode = #tpu.pipeline_mode<synchronous>, transform_indices = @transform_2, window_bounds = array<i64: 1, 128>}, {transform_indices = @transform_3, window_bounds = array<i64: 8, 16, 128>}]} {
    %c0 = arith.constant 0 : index
    %c0_0 = arith.constant 0 : index
    %c0_1 = arith.constant 0 : index
    %0 = vector.load %arg1[%c0, %c0_0, %c0_1] : memref<8x16x32xf32, #tpu.memory_space<vmem>>, vector<8x16x32xf32>
    %cst = arith.constant dense<0xFF800000> : vector<8x32xf32>
    %1 = vector.multi_reduction <maximumf>, %0, %cst [1] : vector<8x16x32xf32> to vector<8x32xf32>
    %2 = vector.shape_cast %1 : vector<8x32xf32> to vector<8x1x32xf32>
    %3 = vector.shape_cast %2 : vector<8x1x32xf32> to vector<8x1x32xf32>
    %4 = vector.broadcast %3 : vector<8x1x32xf32> to vector<8x16x32xf32>
    %5 = tpu.concatenate %0, %4 in 2 : vector<8x16x32xf32>, vector<8x16x32xf32> -> vector<8x16x64xf32>
    %6 = vector.shape_cast %5 : vector<8x16x64xf32> to vector<128x64xf32>
    %c0_2 = arith.constant 0 : index
    %c0_3 = arith.constant 0 : index
    %7 = vector.load %arg2[%c0_2, %c0_3] : memref<64x128xf32, #tpu.memory_space<vmem>>, vector<64x128xf32>
    %cst_4 = arith.constant dense<0.000000e+00> : vector<128x128xf32>
    %8 = tpu.matmul %6, %7, %cst_4 {dimension_numbers = #tpu.dot_dimension_numbers<[1], [0], [0], [1], [0, 0, 1, 1], [], []>} : vector<128x64xf32>, vector<64x128xf32>, vector<128x128xf32> -> vector<128x128xf32>
    %c0_5 = arith.constant 0 : index
    %c0_6 = arith.constant 0 : index
    %9 = vector.load %arg3[%c0_5, %c0_6] : memref<1x128xf32, #tpu.memory_space<vmem>>, vector<1x128xf32>
    %10 = vector.broadcast %9 : vector<1x128xf32> to vector<128x128xf32>
    %11 = arith.addf %8, %10 : vector<128x128xf32>
    %12 = vector.shape_cast %11 : vector<128x128xf32> to vector<8x16x128xf32>
    %c0_7 = arith.constant 0 : index
    %c0_8 = arith.constant 0 : index
    %c0_9 = arith.constant 0 : index
    %13 = vector.load %arg4[%c0_7, %c0_8, %c0_9] : memref<8x16x128xf32, #tpu.memory_space<vmem>>, vector<8x16x128xf32>
    tpu.vector_store %arg4[%c0_7, %c0_8, %c0_9], %12 {strides = array<i32>} : memref<8x16x128xf32, #tpu.memory_space<vmem>>, vector<8x16x128xf32>,
    return
  }
  func.func @transform_0(%arg0: i32) -> (i32, i32, i32) {
    %c0_i32 = arith.constant 0 : i32
    %c0_i32_0 = arith.constant 0 : i32
    %c0_i32_1 = arith.constant 0 : i32
    return %arg0, %c0_i32, %c0_i32_0 : i32, i32, i32
  }
  func.func @transform_1(%arg0: i32) -> (i32, i32) {
    %c0_i32 = arith.constant 0 : i32
    %c0_i32_0 = arith.constant 0 : i32
    %c0_i32_1 = arith.constant 0 : i32
    return %c0_i32, %c0_i32_0 : i32, i32
  }
  func.func @transform_2(%arg0: i32) -> (i32, i32) {
    %c0_i32 = arith.constant 0 : i32
    %c0_i32_0 = arith.constant 0 : i32
    %c0_i32_1 = arith.constant 0 : i32
    return %c0_i32, %c0_i32_0 : i32, i32
  }
  func.func @transform_3(%arg0: i32) -> (i32, i32, i32) {
    %c0_i32 = arith.constant 0 : i32
    %c0_i32_0 = arith.constant 0 : i32
    %c0_i32_1 = arith.constant 0 : i32
    return %arg0, %c0_i32, %c0_i32_0 : i32, i32, i32
  }
}

</mosaic_0001>

<llo_original>
// kernel: tpu_custom_call.1
$region0: #{tpu_custom_call.1}
  #allocation0 [shape = 'u32[]', space=smem, size = 0x4, offset = 0x4, fixed_abs, tag = 'smem constant byte address 0x4 - core index']
  #allocation1 [shape = 'u32[144,128]{1,0:T(1,128)}', space=vmem, size = 0x12000, scoped, tag = 'internal scratch']
  %s0 = inlined_call_operand.hbm [shape: f32[8,16,32], index: 0, kind: input, shape index: {}]
  %s1 = inlined_call_operand.hbm [shape: f32[64,128], index: 1, kind: input, shape index: {}]
  %s2 = inlined_call_operand.vmem [shape: f32[1,128], index: 2, kind: input, shape index: {}]
  %s3 = inlined_call_operand.hbm [shape: f32[8,16,128], index: 3, kind: output, shape index: {}]
  %s4 = sld [smem:[#allocation0]]
  $region30: #{tpu_custom_call.1} parent=0
    _
  %s6 = ssub.s32 1, %s4
  %s7 = scalar_select 0, %s6, %s4
  $region1: #{tpu_custom_call.1} parent=0
    #allocation2 [shape = 'u8[65536]{0}', space=vmem, size = 0x10000, scoped, tag = 'input window, operand 0, single buffered']
    #allocation3 [shape = 's32[1]{0}', space=sflag, size = 0x4, scoped, tag = 'scoped memory for tpu_custom_call.1']
    #allocation4 [shape = 's32[1]{0}', space=sflag, size = 0x4, scoped, tag = 'scoped memory for tpu_custom_call.1']
    #allocation5 [shape = 'u8[32768]{0}', space=vmem, size = 0x8000, scoped, tag = 'input window, operand 1, single buffered']
    #allocation6 [shape = 's32[1]{0}', space=sflag, size = 0x4, scoped, tag = 'scoped memory for tpu_custom_call.1']
    #allocation7 [shape = 'u8[65536]{0}', space=vmem, size = 0x10000, scoped, tag = 'output window, operand 0, single buffered']
    %8 = vsyncpa [#allocation3], 0
    %9 = vsyncpa [#allocation6], 0
    %10 = vsyncpa [#allocation4], 0
    // Predicated region
    $region2: #{tpu_custom_call.1} parent=1 // pred_check
      _
    $region3: #{tpu_custom_call.1} parent=1 // pred_check_branch
      %12 = sbr.rel (0) target = $region5
    $region4: #{tpu_custom_call.1} parent=1 // pred_region
      %s14 = ssub.s32 2048, 2048
      %15 = vsyncadd [#allocation3], %s14
      %s16 = sshll.u32 [#allocation2], 4
      %s17 = int_to_ptr.vmem [resolvable:$true] %s16
      %22 = dma.hbm_to_vmem [thread:$0]  %s0, 2048, %s17, [#allocation3], 128, 128, 8
    $region5: #{tpu_custom_call.1} parent=1 // pred_fallthru
      _
    // Predicated region
    $region6: #{tpu_custom_call.1} parent=1 // pred_check
      _
    $region7: #{tpu_custom_call.1} parent=1 // pred_check_branch
      %24 = sbr.rel (0) target = $region9
    $region8: #{tpu_custom_call.1} parent=1 // pred_region
      %s26 = ssub.s32 1024, 1024
      %27 = vsyncadd [#allocation6], %s26
      %s28 = sshll.u32 [#allocation5], 4
      %s29 = int_to_ptr.vmem [resolvable:$true] %s28
      %34 = dma.hbm_to_vmem [thread:$0]  %s1, 1024, %s29, [#allocation6], 128, 128, 8
    $region9: #{tpu_custom_call.1} parent=1 // pred_fallthru
      _
    // Predicated region
    $region10: #{tpu_custom_call.1} parent=1 // pred_check
      _
    $region11: #{tpu_custom_call.1} parent=1 // pred_check_branch
      %36 = sbr.rel (0) target = $region13
    $region12: #{tpu_custom_call.1} parent=1 // pred_region
      _
    $region13: #{tpu_custom_call.1} parent=1 // pred_fallthru
      _
    // Predicated region
    $region14: #{tpu_custom_call.1} parent=1 // pred_check
      _
    $region15: #{tpu_custom_call.1} parent=1 // pred_check_branch
      %38 = sbr.rel (0) target = $region17
    $region16: #{tpu_custom_call.1} parent=1 // pred_region
      %39 = dma.done [#allocation3], 2048
    $region17: #{tpu_custom_call.1} parent=1 // pred_fallthru
      _
    // Predicated region
    $region18: #{tpu_custom_call.1} parent=1 // pred_check
      _
    $region19: #{tpu_custom_call.1} parent=1 // pred_check_branch
      %41 = sbr.rel (0) target = $region21
    $region20: #{tpu_custom_call.1} parent=1 // pred_region
      %42 = dma.done [#allocation6], 1024
    $region21: #{tpu_custom_call.1} parent=1 // pred_fallthru
      _
    %v43 = vld [vmem:[#allocation2] sm:$0xff]
    %v44 = vld [vmem:[#allocation2 + $0x8] sm:$0xff]
    %v45 = vld [vmem:[#allocation2 + $0x10] sm:$0xff]
    %v46 = vld [vmem:[#allocation2 + $0x18] sm:$0xff]
    %v47 = vld [vmem:[#allocation2 + $0x20] sm:$0xff]
    %v48 = vld [vmem:[#allocation2 + $0x28] sm:$0xff]
    %v49 = vld [vmem:[#allocation2 + $0x30] sm:$0xff]
    %v50 = vld [vmem:[#allocation2 + $0x38] sm:$0xff]
    %v51 = vld [vmem:[#allocation2 + $0x40] sm:$0xff]
    %v52 = vld [vmem:[#allocation2 + $0x48] sm:$0xff]
    %v53 = vld [vmem:[#allocation2 + $0x50] sm:$0xff]
    %v54 = vld [vmem:[#allocation2 + $0x58] sm:$0xff]
    %v55 = vld [vmem:[#allocation2 + $0x60] sm:$0xff]
    %v56 = vld [vmem:[#allocation2 + $0x68] sm:$0xff]
    %v57 = vld [vmem:[#allocation2 + $0x70] sm:$0xff]
    %v58 = vld [vmem:[#allocation2 + $0x78] sm:$0xff]
    %vm59 = vcmask 261120
    %v60 = vsel %vm59, %v43, -inf
    %v61 = vsel %vm59, %v44, -inf
    %v62 = vmax.f32 %v60, %v61
    %v63 = vrot.slane %v62, 4
    %v64 = vmax.f32 %v62, %v63
    %v65 = vrot.slane %v64, 2
    %v66 = vmax.f32 %v64, %v65
    %v67 = vrot.slane %v66, 1
    %v68 = vmax.f32 %v66, %v67
    %v69 = vsel %vm59, %v45, -inf
    %v70 = vsel %vm59, %v46, -inf
    %v71 = vmax.f32 %v69, %v70
    %v72 = vrot.slane %v71, 4
    %v73 = vmax.f32 %v71, %v72
    %v74 = vrot.slane %v73, 2
    %v75 = vmax.f32 %v73, %v74
    %v76 = vrot.slane %v75, 1
    %v77 = vmax.f32 %v75, %v76
    %v78 = vsel %vm59, %v47, -inf
    %v79 = vsel %vm59, %v48, -inf
    %v80 = vmax.f32 %v78, %v79
    %v81 = vrot.slane %v80, 4
    %v82 = vmax.f32 %v80, %v81
    %v83 = vrot.slane %v82, 2
    %v84 = vmax.f32 %v82, %v83
    %v85 = vrot.slane %v84, 1
    %v86 = vmax.f32 %v84, %v85
    %v87 = vsel %vm59, %v49, -inf
    %v88 = vsel %vm59, %v50, -inf
    %v89 = vmax.f32 %v87, %v88
    %v90 = vrot.slane %v89, 4
    %v91 = vmax.f32 %v89, %v90
    %v92 = vrot.slane %v91, 2
    %v93 = vmax.f32 %v91, %v92
    %v94 = vrot.slane %v93, 1
    %v95 = vmax.f32 %v93, %v94
    %v96 = vsel %vm59, %v51, -inf
    %v97 = vsel %vm59, %v52, -inf
    %v98 = vmax.f32 %v96, %v97
    %v99 = vrot.slane %v98, 4
    %v100 = vmax.f32 %v98, %v99
    %v101 = vrot.slane %v100, 2
    %v102 = vmax.f32 %v100, %v101
    %v103 = vrot.slane %v102, 1
    %v104 = vmax.f32 %v102, %v103
    %v105 = vsel %vm59, %v53, -inf
    %v106 = vsel %vm59, %v54, -inf
    %v107 = vmax.f32 %v105, %v106
    %v108 = vrot.slane %v107, 4
    %v109 = vmax.f32 %v107, %v108
    %v110 = vrot.slane %v109, 2
    %v111 = vmax.f32 %v109, %v110
    %v112 = vrot.slane %v111, 1
    %v113 = vmax.f32 %v111, %v112
    %v114 = vsel %vm59, %v55, -inf
    %v115 = vsel %vm59, %v56, -inf
    %v116 = vmax.f32 %v114, %v115
    %v117 = vrot.slane %v116, 4
    %v118 = vmax.f32 %v116, %v117
    %v119 = vrot.slane %v118, 2
    %v120 = vmax.f32 %v118, %v119
    %v121 = vrot.slane %v120, 1
    %v122 = vmax.f32 %v120, %v121
    %v123 = vsel %vm59, %v57, -inf
    %v124 = vsel %vm59, %v58, -inf
    %v125 = vmax.f32 %v123, %v124
    %v126 = vrot.slane %v125, 4
    %v127 = vmax.f32 %v125, %v126
    %v128 = vrot.slane %v127, 2
    %v129 = vmax.f32 %v127, %v128
    %v130 = vrot.slane %v129, 1
    %v131 = vmax.f32 %v129, %v130
    %140 = vrot.lane.b32.xlu0 %v68, 32
    %v141 = vpop.permute.xlu0 %140
    %142 = vrot.lane.b32.xlu0 %v77, 32
    %v143 = vpop.permute.xlu0 %142
    %144 = vrot.lane.b32.xlu0 %v86, 32
    %v145 = vpop.permute.xlu0 %144
    %146 = vrot.lane.b32.xlu0 %v95, 32
    %v147 = vpop.permute.xlu0 %146
    %148 = vrot.lane.b32.xlu0 %v104, 32
    %v149 = vpop.permute.xlu0 %148
    %150 = vrot.lane.b32.xlu0 %v113, 32
    %v151 = vpop.permute.xlu0 %150
    %152 = vrot.lane.b32.xlu0 %v122, 32
    %v153 = vpop.permute.xlu0 %152
    %154 = vrot.lane.b32.xlu0 %v131, 32
    %v155 = vpop.permute.xlu0 %154
    %v164 = vsel %vm59, %v43, %v141
    %v165 = vsel %vm59, %v44, %v141
    %v166 = vsel %vm59, %v45, %v143
    %v167 = vsel %vm59, %v46, %v143
    %v168 = vsel %vm59, %v47, %v145
    %v169 = vsel %vm59, %v48, %v145
    %v170 = vsel %vm59, %v49, %v147
    %v171 = vsel %vm59, %v50, %v147
    %v172 = vsel %vm59, %v51, %v149
    %v173 = vsel %vm59, %v52, %v149
    %v174 = vsel %vm59, %v53, %v151
    %v175 = vsel %vm59, %v54, %v151
    %v176 = vsel %vm59, %v55, %v153
    %v177 = vsel %vm59, %v56, %v153
    %v178 = vsel %vm59, %v57, %v155
    %v179 = vsel %vm59, %v58, %v155
    %v180 = vld [vmem:[#allocation5] sm:$0xff]
    %v181 = vld [vmem:[#allocation5 + $0x8] sm:$0xff]
    %v182 = vld [vmem:[#allocation5 + $0x10] sm:$0xff]
    %v183 = vld [vmem:[#allocation5 + $0x18] sm:$0xff]
    %v184 = vld [vmem:[#allocation5 + $0x20] sm:$0xff]
    %v185 = vld [vmem:[#allocation5 + $0x28] sm:$0xff]
    %v186 = vld [vmem:[#allocation5 + $0x30] sm:$0xff]
    %v187 = vld [vmem:[#allocation5 + $0x38] sm:$0xff]
    %v188 = vld [vmem:[%s2] sm:$0x1]
    %v190 = vlaneseq
    %v191 = vshrl.u32 %v190, 7
    %v192 = vsub.s32 0, %v191
    %v193 = vrot.slane %v188, %v192
    %vm195 = vcmask 523264
    %v197 = vsel %vm195, %v164, 0
    %v200 = vsel %vm195, %v165, 0
    %v203 = vsel %vm195, %v166, 0
    %v206 = vsel %vm195, %v167, 0
    %v209 = vsel %vm195, %v168, 0
    %v212 = vsel %vm195, %v169, 0
    %v215 = vsel %vm195, %v170, 0
    %v218 = vsel %vm195, %v171, 0
    %v221 = vsel %vm195, %v172, 0
    %v224 = vsel %vm195, %v173, 0
    %v227 = vsel %vm195, %v174, 0
    %v230 = vsel %vm195, %v175, 0
    %v233 = vsel %vm195, %v176, 0
    %v236 = vsel %vm195, %v177, 0
    %v239 = vsel %vm195, %v178, 0
    %v242 = vsel %vm195, %v179, 0
    %244 = vmatprep.subr.mxu0 0.0
    %245 = vmatpush1.msra.mxu0 0.0
    %246 = vmatprep.subr.mxu0 0.0
    %247 = vmatpush1.msra.mxu0 0.0
    %248 = vmatprep.subr.mxu0 0.0
    %249 = vmatpush1.msra.mxu0 0.0
    %250 = vmatprep.subr.mxu0 0.0
    %251 = vmatpush1.msra.mxu0 0.0
    %252 = vmatprep.subr.mxu0 0.0
    %253 = vmatpush1.msra.mxu0 0.0
    %254 = vmatprep.subr.mxu0 0.0
    %255 = vmatpush1.msra.mxu0 0.0
    %256 = vmatprep.subr.mxu0 0.0
    %257 = vmatpush1.msra.mxu0 0.0
    %258 = vmatprep.subr.mxu0 0.0
    %259 = vmatpush1.msra.mxu0 0.0
    %260 = vmatprep.subr.mxu0 0.0
    %261 = vmatpush1.msra.mxu0 %v187
    %262 = vmatprep.subr.mxu0 0.0
    %263 = vmatpush1.msra.mxu0 %v186
    %264 = vmatprep.subr.mxu0 0.0
    %265 = vmatpush1.msra.mxu0 %v185
    %266 = vmatprep.subr.mxu0 0.0
    %267 = vmatpush1.msra.mxu0 %v184
    %268 = vmatprep.subr.mxu0 0.0
    %269 = vmatpush1.msra.mxu0 %v183
    %270 = vmatprep.subr.mxu0 0.0
    %271 = vmatpush1.msra.mxu0 %v182
    %272 = vmatprep.subr.mxu0 0.0
    %273 = vmatpush1.msra.mxu0 %v181
    %274 = vmatprep.subr.mxu0 0.0
    %275 = vmatpush1.msra.mxu0 %v180
    %276 = vmatprep.subr.mxu0 0.0
    %277 = vmatpush2.msra.mxu0 0.0
    %278 = vmatprep.subr.mxu0 0.0
    %279 = vmatpush2.msra.mxu0 0.0
    %280 = vmatprep.subr.mxu0 0.0
    %281 = vmatpush2.msra.mxu0 0.0
    %282 = vmatprep.subr.mxu0 0.0
    %283 = vmatpush2.msra.mxu0 0.0
    %284 = vmatprep.subr.mxu0 0.0
    %285 = vmatpush2.msra.mxu0 0.0
    %286 = vmatprep.subr.mxu0 0.0
    %287 = vmatpush2.msra.mxu0 0.0
    %288 = vmatprep.subr.mxu0 0.0
    %289 = vmatpush2.msra.mxu0 0.0
    %290 = vmatprep.subr.mxu0 0.0
    %291 = vmatpush2.msra.mxu0 0.0
    %292 = vmatprep.subr.mxu0 0.0
    %293 = vmatpush2.msra.mxu0 0.0
    %294 = vmatprep.subr.mxu0 0.0
    %295 = vmatpush2.msra.mxu0 0.0
    %296 = vmatprep.subr.mxu0 0.0
    %297 = vmatpush2.msra.mxu0 0.0
    %298 = vmatprep.subr.mxu0 0.0
    %299 = vmatpush2.msra.mxu0 0.0
    %300 = vmatprep.subr.mxu0 0.0
    %301 = vmatpush2.msra.mxu0 0.0
    %302 = vmatprep.subr.mxu0 0.0
    %303 = vmatpush2.msra.mxu0 0.0
    %304 = vmatprep.subr.mxu0 0.0
    %305 = vmatpush2.msra.mxu0 0.0
    %306 = vmatprep.subr.mxu0 0.0
    %307 = vmatpush2.msra.mxu0 0.0
    %308 = vmatprep.mubr.f32.mxu0 0.0
    %309 = vmatmul.mubr.f32.gmra.mxu0 %v197
    %v310 = vpop.f32.mrf.mxu0
    %v311 = vadd.f32 %v193, %v310
    %v312 = vpop.f32.mrf.mxu0
    %313 = vmatprep.mubr.f32.mxu0 0.0
    %314 = vmatmul.mubr.f32.gmra.mxu0 %v200
    %v315 = vpop.f32.mrf.mxu0
    %v316 = vadd.f32 %v193, %v315
    %v317 = vpop.f32.mrf.mxu0
    %318 = vmatprep.mubr.f32.mxu0 0.0
    %319 = vmatmul.mubr.f32.gmra.mxu0 %v203
    %v320 = vpop.f32.mrf.mxu0
    %v321 = vadd.f32 %v193, %v320
    %v322 = vpop.f32.mrf.mxu0
    %323 = vmatprep.mubr.f32.mxu0 0.0
    %324 = vmatmul.mubr.f32.gmra.mxu0 %v206
    %v325 = vpop.f32.mrf.mxu0
    %v326 = vadd.f32 %v193, %v325
    %v327 = vpop.f32.mrf.mxu0
    %328 = vmatprep.mubr.f32.mxu0 0.0
    %329 = vmatmul.mubr.f32.gmra.mxu0 %v209
    %v330 = vpop.f32.mrf.mxu0
    %v331 = vadd.f32 %v193, %v330
    %v332 = vpop.f32.mrf.mxu0
    %333 = vmatprep.mubr.f32.mxu0 0.0
    %334 = vmatmul.mubr.f32.gmra.mxu0 %v212
    %v335 = vpop.f32.mrf.mxu0
    %v336 = vadd.f32 %v193, %v335
    %v337 = vpop.f32.mrf.mxu0
    %338 = vmatprep.mubr.f32.mxu0 0.0
    %339 = vmatmul.mubr.f32.gmra.mxu0 %v215
    %v340 = vpop.f32.mrf.mxu0
    %v341 = vadd.f32 %v193, %v340
    %v342 = vpop.f32.mrf.mxu0
    %343 = vmatprep.mubr.f32.mxu0 0.0
    %344 = vmatmul.mubr.f32.gmra.mxu0 %v218
    %v345 = vpop.f32.mrf.mxu0
    %v346 = vadd.f32 %v193, %v345
    %v347 = vpop.f32.mrf.mxu0
    %348 = vmatprep.mubr.f32.mxu0 0.0
    %349 = vmatmul.mubr.f32.gmra.mxu0 %v221
    %v350 = vpop.f32.mrf.mxu0
    %v351 = vadd.f32 %v193, %v350
    %v352 = vpop.f32.mrf.mxu0
    %353 = vmatprep.mubr.f32.mxu0 0.0
    %354 = vmatmul.mubr.f32.gmra.mxu0 %v224
    %v355 = vpop.f32.mrf.mxu0
    %v356 = vadd.f32 %v193, %v355
    %v357 = vpop.f32.mrf.mxu0
    %358 = vmatprep.mubr.f32.mxu0 0.0
    %359 = vmatmul.mubr.f32.gmra.mxu0 %v227
    %v360 = vpop.f32.mrf.mxu0
    %v361 = vadd.f32 %v193, %v360
    %v362 = vpop.f32.mrf.mxu0
    %363 = vmatprep.mubr.f32.mxu0 0.0
    %364 = vmatmul.mubr.f32.gmra.mxu0 %v230
    %v365 = vpop.f32.mrf.mxu0
    %v366 = vadd.f32 %v193, %v365
    %v367 = vpop.f32.mrf.mxu0
    %368 = vmatprep.mubr.f32.mxu0 0.0
    %369 = vmatmul.mubr.f32.gmra.mxu0 %v233
    %v370 = vpop.f32.mrf.mxu0
    %v371 = vadd.f32 %v193, %v370
    %v372 = vpop.f32.mrf.mxu0
    %373 = vmatprep.mubr.f32.mxu0 0.0
    %374 = vmatmul.mubr.f32.gmra.mxu0 %v236
    %v375 = vpop.f32.mrf.mxu0
    %v376 = vadd.f32 %v193, %v375
    %v377 = vpop.f32.mrf.mxu0
    %378 = vmatprep.mubr.f32.mxu0 0.0
    %379 = vmatmul.mubr.f32.gmra.mxu0 %v239
    %v380 = vpop.f32.mrf.mxu0
    %v381 = vadd.f32 %v193, %v380
    %v382 = vpop.f32.mrf.mxu0
    %383 = vmatprep.mubr.f32.mxu0 0.0
    %384 = vmatmul.mubr.f32.gmra.mxu0 %v242
    %v385 = vpop.f32.mrf.mxu0
    %v386 = vadd.f32 %v193, %v385
    %v387 = vpop.f32.mrf.mxu0
    %388 = vdwg.mxu0
    %389 = vst [vmem:[#allocation7] sm:$0xff] %v311
    %390 = vst [vmem:[#allocation7 + $0x8] sm:$0xff] %v316
    %391 = vst [vmem:[#allocation7 + $0x10] sm:$0xff] %v321
    %392 = vst [vmem:[#allocation7 + $0x18] sm:$0xff] %v326
    %393 = vst [vmem:[#allocation7 + $0x20] sm:$0xff] %v331
    %394 = vst [vmem:[#allocation7 + $0x28] sm:$0xff] %v336
    %395 = vst [vmem:[#allocation7 + $0x30] sm:$0xff] %v341
    %396 = vst [vmem:[#allocation7 + $0x38] sm:$0xff] %v346
    %397 = vst [vmem:[#allocation7 + $0x40] sm:$0xff] %v351
    %398 = vst [vmem:[#allocation7 + $0x48] sm:$0xff] %v356
    %399 = vst [vmem:[#allocation7 + $0x50] sm:$0xff] %v361
    %400 = vst [vmem:[#allocation7 + $0x58] sm:$0xff] %v366
    %401 = vst [vmem:[#allocation7 + $0x60] sm:$0xff] %v371
    %402 = vst [vmem:[#allocation7 + $0x68] sm:$0xff] %v376
    %403 = vst [vmem:[#allocation7 + $0x70] sm:$0xff] %v381
    %404 = vst [vmem:[#allocation7 + $0x78] sm:$0xff] %v386
    // Predicated region
    $region22: #{tpu_custom_call.1} parent=1 // pred_check
      _
    $region23: #{tpu_custom_call.1} parent=1 // pred_check_branch
      %406 = sbr.rel (0) target = $region25
    $region24: #{tpu_custom_call.1} parent=1 // pred_region
      %s408 = ssub.s32 2048, 2048
      %409 = vsyncadd [#allocation4], %s408
      %s410 = sshll.u32 [#allocation7], 4
      %s411 = int_to_ptr.vmem [resolvable:$true] %s410
      %416 = dma.vmem_to_hbm [thread:$0]  %s411, 2048, %s3, [#allocation4], 128, 128, 8
    $region25: #{tpu_custom_call.1} parent=1 // pred_fallthru
      _
    // Predicated region
    $region26: #{tpu_custom_call.1} parent=1 // pred_check
      _
    $region27: #{tpu_custom_call.1} parent=1 // pred_check_branch
      %418 = sbr.rel (0) target = $region29
    $region28: #{tpu_custom_call.1} parent=1 // pred_region
      %419 = dma.done [#allocation4], 2048
    $region29: #{tpu_custom_call.1} parent=1 // pred_fallthru
      _
    %420 = vsyncpa [#allocation3], 1
    %421 = vsyncpa [#allocation6], 1
    %422 = vsyncpa [#allocation4], 1

</llo_original>
